<compile_context>
chip_gen: v6e
topology: v6e:2x2x1
jax: 0.10.0
libtpu: 0.0.40
codegen_flags: <defaults>
</compile_context>

<pallas_src>
import functools

import jax
import jax.numpy as jnp
from jax.experimental import pallas as pl
from jax.experimental.pallas import tpu as pltpu


def _round_up(x, m):
    return (x + m - 1) // m * m


# -----------------------------------------------------------------------------
# Kernel
# -----------------------------------------------------------------------------
def gmu_kernel(x1_ref, x2_ref, wcat1_ref, bcat1_ref, wcat2_ref, b2_ref,
               out_ref, *, hp):
    """One row tile of the GMU.

    x1_ref : [T, Da]     (true feature width, may be < 128)
    x2_ref : [T, Db]
    wcat1  : [Da, 2*hp]  = [W1^T | Wz_a^T]   (column-padded to hp each)
    bcat1  : [1,  2*hp]  = [b1   | bz]
    wcat2  : [Db, 2*hp]  = [W2^T | Wz_b^T]
    b2     : [1,  hp]
    out_ref: [T, H]      (true hidden width, may be < hp)
    """
    x1 = x1_ref[...]
    x2 = x2_ref[...]

    # Two fused matmuls (the h-branch and its z-gate contribution share one MXU
    # pass per input branch). f32 accumulation on the MXU.
    y1 = jnp.dot(x1, wcat1_ref[...], preferred_element_type=jnp.float32) + bcat1_ref[...]
    y2 = jnp.dot(x2, wcat2_ref[...], preferred_element_type=jnp.float32)

    # f32 epilogue (EUP transcendentals; v5e has no bf16 VPU/EUP path).
    h1 = jnp.tanh(y1[:, :hp])
    h2 = jnp.tanh(y2[:, :hp] + b2_ref[...])              # b2 only on the h-half
    # sigmoid(x) == 0.5 * (tanh(x/2) + 1): one EUP push per element.
    z = 0.5 * (jnp.tanh(0.5 * (y1[:, hp:] + y2[:, hp:])) + 1.0)

    fused = h2 + z * (h1 - h2)                            # == z*h1 + (1-z)*h2
    out_ref[...] = fused[:, : out_ref.shape[1]].astype(out_ref.dtype)


# -----------------------------------------------------------------------------
# Parameter preparation: fuse the three Linears into two matmuls.
# -----------------------------------------------------------------------------
def fuse_params(p, *, param_dtype=jnp.bfloat16):
    """Fuse [W1^T|Wz_a^T] and [W2^T|Wz_b^T]. Columns are zero-padded to a
    multiple of 128 (lane-tile boundary between h-half and z-half); rows keep
    the TRUE feature width — no activation padding is ever required."""
    da, h = p["w1_t"].shape
    db, _ = p["w2_t"].shape
    hp = _round_up(h, 128)

    def pad_cols(w):
        return jnp.pad(w, ((0, 0), (0, hp - w.shape[1])))

    wcat1 = jnp.concatenate([pad_cols(p["w1_t"]), pad_cols(p["wz_a_t"])], axis=1)
    wcat2 = jnp.concatenate([pad_cols(p["w2_t"]), pad_cols(p["wz_b_t"])], axis=1)
    bcat1 = jnp.concatenate([pad_cols(p["b1"]), pad_cols(p["bz"])], axis=1)
    b2 = pad_cols(p["b2"])

    return {
        "wcat1": wcat1.astype(param_dtype),   # [Da, 2*Hp]
        "wcat2": wcat2.astype(param_dtype),   # [Db, 2*Hp]
        "bcat1": bcat1.astype(jnp.float32),   # [1, 2*Hp]  (biases stay f32)
        "b2": b2.astype(jnp.float32),         # [1, Hp]
        "Da": da, "Db": db, "H": h, "Hp": hp,
    }


# -----------------------------------------------------------------------------
# Wrapper
# -----------------------------------------------------------------------------
def gmu_forward(x1, x2, fused, *, tile_rows=512):
    """edge_attr1: [N, Da], edge_attr2: [N, Db] -> [N, H] float32."""
    N, Da = x1.shape
    _, Db = x2.shape
    H, Hp = fused["H"], fused["Hp"]
    assert Da == fused["Da"] and Db == fused["Db"]

    wdtype = fused["wcat1"].dtype
    # TODO(synk): ideally the upstream producer already emits activations in
    # `wdtype` (bf16); this cast is then a no-op.
    x1 = x1.astype(wdtype)
    x2 = x2.astype(wdtype)

    # Row tile: multiple of 8; capped at ~ceil(N/2) so the parallel row axis has
    # at least two grid steps (keeps both v7x TensorCores busy) unless N <= 8.
    tile_rows = _round_up(max(tile_rows, 8), 8)
    tile_rows = min(tile_rows, max(8, _round_up(pl.cdiv(N, 2), 8)))
    grid = (pl.cdiv(N, tile_rows),)

    act_bytes = jnp.dtype(wdtype).itemsize
    # VMEM need: double-buffered activation/output tiles + single-buffered
    # resident weights/biases + headroom for the f32 y1/y2/epilogue temporaries.
    need = (2 * tile_rows * (Da + Db) * act_bytes
            + 2 * tile_rows * H * 4
            + (Da + Db) * 2 * Hp * act_bytes + 3 * Hp * 4
            + 6 * tile_rows * Hp * 4)
    # Re-derived per actual need; hard cap at 64 MiB (v7x total VMEM).
    vmem_limit = int(min(max(2 * need, 16 * 1024 * 1024), 64 * 1024 * 1024))

    cost = pl.CostEstimate(
        flops=2 * N * (Da + Db) * 2 * Hp,
        transcendentals=3 * N * Hp,
        bytes_accessed=(N * (Da + Db) * act_bytes            # activations in
                        + (Da + Db) * 2 * Hp * act_bytes     # weights
                        + 3 * Hp * 4                         # biases
                        + N * H * 4),                        # output
    )

    row_spec = lambda d: pl.BlockSpec((tile_rows, d), lambda i: (i, 0))
    # Resident (grid-invariant) operands: fetched once, single-buffered.
    res_spec = lambda r, c: pl.BlockSpec((r, c), lambda i: (0, 0),
                                         pipeline_mode=pl.Buffered(1))

    out = pl.pallas_call(
        functools.partial(gmu_kernel, hp=Hp),
        out_shape=jax.ShapeDtypeStruct((N, H), jnp.float32),
        grid=grid,
        in_specs=[
            row_spec(Da),              # x1 tile (true width)
            row_spec(Db),              # x2 tile (true width)
            res_spec(Da, 2 * Hp),      # [W1^T | Wz_a^T]
            res_spec(1, 2 * Hp),       # [b1 | bz]
            res_spec(Db, 2 * Hp),      # [W2^T | Wz_b^T]
            res_spec(1, Hp),           # b2
        ],
        out_specs=row_spec(H),         # true output width -> no post-slice copy
        compiler_params=pltpu.CompilerParams(
            dimension_semantics=("parallel",),
            vmem_limit_bytes=vmem_limit,
        ),
        cost_estimate=cost,
    )(x1, x2, fused["wcat1"], fused["bcat1"], fused["wcat2"], fused["b2"])

    return out


# -----------------------------------------------------------------------------
# Synthetic parameters (PyTorch-Linear-like init) and pure-JAX reference.
# -----------------------------------------------------------------------------
def init_params(key, input_dim_a, input_dim_b, hidden_dim):
    ks = jax.random.split(key, 6)

    def lin(kw, kb, fan_in, fan_out):
        bound = 1.0 / jnp.sqrt(fan_in)
        # weight stored pre-transposed: [fan_in, fan_out]
        w_t = jax.random.uniform(kw, (fan_in, fan_out), jnp.float32, -bound, bound)
        b = jax.random.uniform(kb, (1, fan_out), jnp.float32, -bound, bound)
        return w_t, b

    w1_t, b1 = lin(ks[0], ks[1], input_dim_a, hidden_dim)
    w2_t, b2 = lin(ks[2], ks[3], input_dim_b, hidden_dim)
    wz_t, bz = lin(ks[4], ks[5], input_dim_a + input_dim_b, hidden_dim)
    # gate weight split: rows [0:Da] multiply x1, rows [Da:] multiply x2
    return {
        "w1_t": w1_t, "b1": b1,
        "w2_t": w2_t, "b2": b2,
        "wz_a_t": wz_t[:input_dim_a], "wz_b_t": wz_t[input_dim_a:], "bz": bz,
    }


def gmu_reference(x1, x2, p):
    hi = jax.lax.Precision.HIGHEST
    h1 = jnp.tanh(jnp.dot(x1, p["w1_t"], precision=hi) + p["b1"])
    h2 = jnp.tanh(jnp.dot(x2, p["w2_t"], precision=hi) + p["b2"])
    z_in = jnp.concatenate([x1, x2], axis=-1)
    wz = jnp.concatenate([p["wz_a_t"], p["wz_b_t"]], axis=0)
    z = jax.nn.sigmoid(jnp.dot(z_in, wz, precision=hi) + p["bz"])
    return z * h1 + (1.0 - z) * h2


if __name__ == "__main__":
    # TODO(synk): nn.Dropout is stochastic in training mode; implemented here as
    # inference-mode identity (standard forward-pass semantics).
    input_dim_a, input_dim_b, hidden_dim = 20, 20, 20   # module defaults
    num_edges = 64

    key = jax.random.PRNGKey(0)
    kp, k1, k2, k3, k4 = jax.random.split(key, 5)

    params = init_params(kp, input_dim_a, input_dim_b, hidden_dim)

    edge_attr1 = jax.random.normal(k1, (num_edges, input_dim_a), jnp.float32)
    edge_attr2 = jax.random.normal(k2, (num_edges, input_dim_b), jnp.float32)
    ref = gmu_reference(edge_attr1, edge_attr2, params)

    # f32 storage path. Tolerance accounts for MXU multi-pass f32 precision.
    fused_f32 = fuse_params(params, param_dtype=jnp.float32)
    out = gmu_forward(edge_attr1, edge_attr2, fused_f32)
    jax.block_until_ready(out)
    assert out.shape == (num_edges, hidden_dim)
    assert jnp.allclose(out, ref, atol=2e-2, rtol=2e-2), "f32 mismatch vs reference"

    # bf16 storage path (default deployment config; halves input HBM traffic).
    fused_bf16 = fuse_params(params, param_dtype=jnp.bfloat16)
    out_bf = gmu_forward(edge_attr1, edge_attr2, fused_bf16)
    jax.block_until_ready(out_bf)
    assert out_bf.shape == (num_edges, hidden_dim)
    assert jnp.allclose(out_bf, ref, atol=5e-2, rtol=5e-2), "bf16 mismatch vs reference"

    # Ragged row count: exercises the partial last grid block (no host padding).
    n2 = 300
    ea1 = jax.random.normal(k3, (n2, input_dim_a), jnp.float32)
    ea2 = jax.random.normal(k4, (n2, input_dim_b), jnp.float32)
    out2 = gmu_forward(ea1, ea2, fused_bf16, tile_rows=128)
    jax.block_until_ready(out2)
    ref2 = gmu_reference(ea1, ea2, params)
    assert out2.shape == (n2, hidden_dim)
    assert jnp.allclose(out2, ref2, atol=5e-2, rtol=5e-2), "ragged mismatch vs reference"

    print("KERNEL_OK")
</pallas_src>

<mosaic_0001>
module attributes {stable_mosaic.version = 11 : i64} {
  func.func @gmu_kernel(%arg0: i32, %arg1: memref<32x20xf32, #tpu.memory_space<vmem>>, %arg2: memref<32x20xf32, #tpu.memory_space<vmem>>, %arg3: memref<20x256xf32, #tpu.memory_space<vmem>>, %arg4: memref<1x256xf32, #tpu.memory_space<vmem>>, %arg5: memref<20x256xf32, #tpu.memory_space<vmem>>, %arg6: memref<1x128xf32, #tpu.memory_space<vmem>>, %arg7: memref<32x20xf32, #tpu.memory_space<vmem>>) attributes {dimension_semantics = [#tpu.dimension_semantics<parallel>], iteration_bounds = array<i64: 2>, scalar_prefetch = 0 : i64, scratch_operands = 0 : i64, tpu.core_type = #tpu.core_type<tc>, window_params = [{transform_indices = @transform_0, window_bounds = array<i64: 32, 20>}, {transform_indices = @transform_1, window_bounds = array<i64: 32, 20>}, {pipeline_mode = #tpu.pipeline_mode<synchronous>, transform_indices = @transform_2, window_bounds = array<i64: 20, 256>}, {pipeline_mode = #tpu.pipeline_mode<synchronous>, transform_indices = @transform_3, window_bounds = array<i64: 1, 256>}, {pipeline_mode = #tpu.pipeline_mode<synchronous>, transform_indices = @transform_4, window_bounds = array<i64: 20, 256>}, {pipeline_mode = #tpu.pipeline_mode<synchronous>, transform_indices = @transform_5, window_bounds = array<i64: 1, 128>}, {transform_indices = @transform_6, window_bounds = array<i64: 32, 20>}]} {
    %c0 = arith.constant 0 : index
    %c0_0 = arith.constant 0 : index
    %0 = vector.load %arg1[%c0, %c0_0] : memref<32x20xf32, #tpu.memory_space<vmem>>, vector<32x20xf32>
    %c0_1 = arith.constant 0 : index
    %c0_2 = arith.constant 0 : index
    %1 = vector.load %arg2[%c0_1, %c0_2] : memref<32x20xf32, #tpu.memory_space<vmem>>, vector<32x20xf32>
    %c0_3 = arith.constant 0 : index
    %c0_4 = arith.constant 0 : index
    %2 = vector.load %arg3[%c0_3, %c0_4] : memref<20x256xf32, #tpu.memory_space<vmem>>, vector<20x256xf32>
    %cst = arith.constant dense<0.000000e+00> : vector<32x256xf32>
    %3 = tpu.matmul %0, %2, %cst {dimension_numbers = #tpu.dot_dimension_numbers<[1], [0], [0], [1], [0, 0, 1, 1], [], []>} : vector<32x20xf32>, vector<20x256xf32>, vector<32x256xf32> -> vector<32x256xf32>
    %c0_5 = arith.constant 0 : index
    %c0_6 = arith.constant 0 : index
    %4 = vector.load %arg4[%c0_5, %c0_6] : memref<1x256xf32, #tpu.memory_space<vmem>>, vector<1x256xf32>
    %5 = vector.broadcast %4 : vector<1x256xf32> to vector<32x256xf32>
    %6 = arith.addf %3, %5 : vector<32x256xf32>
    %c0_7 = arith.constant 0 : index
    %c0_8 = arith.constant 0 : index
    %7 = vector.load %arg5[%c0_7, %c0_8] : memref<20x256xf32, #tpu.memory_space<vmem>>, vector<20x256xf32>
    %cst_9 = arith.constant dense<0.000000e+00> : vector<32x256xf32>
    %8 = tpu.matmul %1, %7, %cst_9 {dimension_numbers = #tpu.dot_dimension_numbers<[1], [0], [0], [1], [0, 0, 1, 1], [], []>} : vector<32x20xf32>, vector<20x256xf32>, vector<32x256xf32> -> vector<32x256xf32>
    %9 = vector.extract_strided_slice %6 {offsets = [0, 0], sizes = [32, 128], strides = [1, 1]} : vector<32x256xf32> to vector<32x128xf32>
    %10 = math.tanh %9 : vector<32x128xf32>
    %11 = vector.extract_strided_slice %8 {offsets = [0, 0], sizes = [32, 128], strides = [1, 1]} : vector<32x256xf32> to vector<32x128xf32>
    %c0_10 = arith.constant 0 : index
    %c0_11 = arith.constant 0 : index
    %12 = vector.load %arg6[%c0_10, %c0_11] : memref<1x128xf32, #tpu.memory_space<vmem>>, vector<1x128xf32>
    %13 = vector.broadcast %12 : vector<1x128xf32> to vector<32x128xf32>
    %14 = arith.addf %11, %13 : vector<32x128xf32>
    %15 = math.tanh %14 : vector<32x128xf32>
    %16 = vector.extract_strided_slice %6 {offsets = [0, 128], sizes = [32, 128], strides = [1, 1]} : vector<32x256xf32> to vector<32x128xf32>
    %17 = vector.extract_strided_slice %8 {offsets = [0, 128], sizes = [32, 128], strides = [1, 1]} : vector<32x256xf32> to vector<32x128xf32>
    %18 = arith.addf %16, %17 : vector<32x128xf32>
    %cst_12 = arith.constant 5.000000e-01 : f32
    %19 = vector.broadcast %cst_12 : f32 to vector<32x128xf32>
    %20 = arith.mulf %19, %18 : vector<32x128xf32>
    %21 = math.tanh %20 : vector<32x128xf32>
    %cst_13 = arith.constant 1.000000e+00 : f32
    %22 = vector.broadcast %cst_13 : f32 to vector<32x128xf32>
    %23 = arith.addf %21, %22 : vector<32x128xf32>
    %cst_14 = arith.constant 5.000000e-01 : f32
    %24 = vector.broadcast %cst_14 : f32 to vector<32x128xf32>
    %25 = arith.mulf %24, %23 : vector<32x128xf32>
    %26 = arith.subf %10, %15 : vector<32x128xf32>
    %27 = arith.mulf %25, %26 : vector<32x128xf32>
    %28 = arith.addf %15, %27 : vector<32x128xf32>
    %29 = vector.extract_strided_slice %28 {offsets = [0, 0], sizes = [32, 20], strides = [1, 1]} : vector<32x128xf32> to vector<32x20xf32>
    %c0_15 = arith.constant 0 : index
    %c0_16 = arith.constant 0 : index
    %30 = vector.load %arg7[%c0_15, %c0_16] : memref<32x20xf32, #tpu.memory_space<vmem>>, vector<32x20xf32>
    tpu.vector_store %arg7[%c0_15, %c0_16], %29 {strides = array<i32>} : memref<32x20xf32, #tpu.memory_space<vmem>>, vector<32x20xf32>,
    return
  }
  func.func @transform_0(%arg0: i32) -> (i32, i32) {
    %c0_i32 = arith.constant 0 : i32
    %c0_i32_0 = arith.constant 0 : i32
    return %arg0, %c0_i32 : i32, i32
  }
  func.func @transform_1(%arg0: i32) -> (i32, i32) {
    %c0_i32 = arith.constant 0 : i32
    %c0_i32_0 = arith.constant 0 : i32
    return %arg0, %c0_i32 : i32, i32
  }
  func.func @transform_2(%arg0: i32) -> (i32, i32) {
    %c0_i32 = arith.constant 0 : i32
    %c0_i32_0 = arith.constant 0 : i32
    %c0_i32_1 = arith.constant 0 : i32
    return %c0_i32, %c0_i32_0 : i32, i32
  }
  func.func @transform_3(%arg0: i32) -> (i32, i32) {
    %c0_i32 = arith.constant 0 : i32
    %c0_i32_0 = arith.constant 0 : i32
    %c0_i32_1 = arith.constant 0 : i32
    return %c0_i32, %c0_i32_0 : i32, i32
  }
  func.func @transform_4(%arg0: i32) -> (i32, i32) {
    %c0_i32 = arith.constant 0 : i32
    %c0_i32_0 = arith.constant 0 : i32
    %c0_i32_1 = arith.constant 0 : i32
    return %c0_i32, %c0_i32_0 : i32, i32
  }
  func.func @transform_5(%arg0: i32) -> (i32, i32) {
    %c0_i32 = arith.constant 0 : i32
    %c0_i32_0 = arith.constant 0 : i32
    %c0_i32_1 = arith.constant 0 : i32
    return %c0_i32, %c0_i32_0 : i32, i32
  }
  func.func @transform_6(%arg0: i32) -> (i32, i32) {
    %c0_i32 = arith.constant 0 : i32
    %c0_i32_0 = arith.constant 0 : i32
    return %arg0, %c0_i32 : i32, i32
  }
}

</mosaic_0001>

<llo_original>
// kernel: tpu_custom_call.1
$region0: #{tpu_custom_call.1}
  #allocation0 [shape = 'u32[]', space=smem, size = 0x4, offset = 0x4, fixed_abs, tag = 'smem constant byte address 0x4 - core index']
  #allocation1 [shape = 'u32[144,128]{1,0:T(1,128)}', space=vmem, size = 0x12000, scoped, tag = 'internal scratch']
  %s0 = inlined_call_operand.vmem [shape: f32[64,20], index: 0, kind: input, shape index: {}]
  %s1 = inlined_call_operand.vmem [shape: f32[64,20], index: 1, kind: input, shape index: {}]
  %s2 = inlined_call_operand.vmem [shape: f32[20,256], index: 2, kind: input, shape index: {}]
  %s3 = inlined_call_operand.vmem [shape: f32[1,256], index: 3, kind: input, shape index: {}]
  %s4 = inlined_call_operand.vmem [shape: f32[20,256], index: 4, kind: input, shape index: {}]
  %s5 = inlined_call_operand.vmem [shape: f32[1,128], index: 5, kind: input, shape index: {}]
  %s6 = inlined_call_operand.vmem [shape: f32[64,20], index: 6, kind: output, shape index: {}]
  %s7 = sld [smem:[#allocation0]]
  $region57: #{tpu_custom_call.1} parent=0
    _
  %s9 = ssub.s32 1, %s7
  %s10 = scalar_select 0, %s9, %s7
  loop: start=0, step=1, limit=4
  $region2: #{tpu_custom_call.1} parent=0 // loop_pre_header
    _
  $region3: #{tpu_custom_call.1} parent=0 // loop_header
    %s12 = sphi 0, %s16
    %p13 = scmp.ge.s32.totalorder %s12, 4
    %s22 = sphi 0, %s24
    %s25 = sphi 0, %s22
    %s26 = sphi 0, %s25
    %s42 = sphi 0, %s26
    %s48 = sphi 0, %s50
    %s51 = sphi 0, %s48
    %s52 = sphi 0, %s51
    %s68 = sphi 0, %s52
    %s72 = sphi 0, %s72
    %s74 = sphi 0, %s72
    %s75 = sphi 0, %s74
    %s89 = sphi 0, %s75
    %s93 = sphi 0, %s93
    %s95 = sphi 0, %s93
    %s96 = sphi 0, %s95
    %s110 = sphi 0, %s96
    %s114 = sphi 0, %s114
    %s116 = sphi 0, %s114
    %s117 = sphi 0, %s116
    %s131 = sphi 0, %s117
    %s135 = sphi 0, %s135
    %s137 = sphi 0, %s135
    %s138 = sphi 0, %s137
    %s152 = sphi 0, %s138
    %s158 = sphi 0, %s160
    %s161 = sphi 0, %s158
    %s162 = sphi 0, %s161
    %s178 = sphi 0, %s162
  $region4: #{tpu_custom_call.1} parent=0 // loop_header_branch
    %15 = sbr.rel (%p13) target = $region8
  $region5: #{tpu_custom_call.1} parent=0 // loop_body
    %s17 = ssub.s32 %s12, 1
    %s18 = ssub.s32 %s12, 2
    %s19 = sadd.s32 %s12, 1
    %s20 = ssub.s32 %s12, %s19
    %p21 = scmp.eq.s32.totalorder %s20, 0
    %s23 = sadd.s32 %s22, 1
    %s24 = scalar_select %p21, %s22, %s23
    %p27 = pneg %p21
    %p28 = scmp.eq.s32.totalorder %s12, 1
    %p29 = por %p27, %p28
    %p30 = scmp.ne.s32.totalorder %s22, %s25
    %p31 = scmp.eq.s32.totalorder %s12, 0
    %p32 = por %p30, %p31
    %p33 = scmp.ne.s32.totalorder %s22, %s25
    %p34 = scmp.eq.s32.totalorder %s17, 1
    %p35 = por %p33, %p34
    %p36 = scmp.ne.s32.totalorder %s25, %s26
    %p37 = scmp.eq.s32.totalorder %s17, 0
    %p38 = por %p36, %p37
    %p39 = scmp.ne.s32.totalorder %s25, %s26
    %p40 = scmp.eq.s32.totalorder %s18, 1
    %p41 = por %p39, %p40
    %p43 = scmp.ne.s32.totalorder %s26, %s42
    %p44 = scmp.eq.s32.totalorder %s18, 0
    %p45 = por %p43, %p44
    %s46 = ssub.s32 %s12, %s19
    %p47 = scmp.eq.s32.totalorder %s46, 0
    %s49 = sadd.s32 %s48, 1
    %s50 = scalar_select %p47, %s48, %s49
    %p53 = pneg %p47
    %p54 = scmp.eq.s32.totalorder %s12, 1
    %p55 = por %p53, %p54
    %p56 = scmp.ne.s32.totalorder %s48, %s51
    %p57 = scmp.eq.s32.totalorder %s12, 0
    %p58 = por %p56, %p57
    %p59 = scmp.ne.s32.totalorder %s48, %s51
    %p60 = scmp.eq.s32.totalorder %s17, 1
    %p61 = por %p59, %p60
    %p62 = scmp.ne.s32.totalorder %s51, %s52
    %p63 = scmp.eq.s32.totalorder %s17, 0
    %p64 = por %p62, %p63
    %p65 = scmp.ne.s32.totalorder %s51, %s52
    %p66 = scmp.eq.s32.totalorder %s18, 1
    %p67 = por %p65, %p66
    %p69 = scmp.ne.s32.totalorder %s52, %s68
    %p70 = scmp.eq.s32.totalorder %s18, 0
    %p71 = por %p69, %p70
    %s73 = sadd.s32 %s72, 1
    %p76 = scmp.eq.s32.totalorder %s12, 1
    %p77 = scmp.ne.s32.totalorder %s72, %s74
    %p78 = scmp.eq.s32.totalorder %s12, 0
    %p79 = por %p77, %p78
    %p80 = scmp.ne.s32.totalorder %s72, %s74
    %p81 = scmp.eq.s32.totalorder %s17, 1
    %p82 = por %p80, %p81
    %p83 = scmp.ne.s32.totalorder %s74, %s75
    %p84 = scmp.eq.s32.totalorder %s17, 0
    %p85 = por %p83, %p84
    %p86 = scmp.ne.s32.totalorder %s74, %s75
    %p87 = scmp.eq.s32.totalorder %s18, 1
    %p88 = por %p86, %p87
    %p90 = scmp.ne.s32.totalorder %s75, %s89
    %p91 = scmp.eq.s32.totalorder %s18, 0
    %p92 = por %p90, %p91
    %s94 = sadd.s32 %s93, 1
    %p97 = scmp.eq.s32.totalorder %s12, 1
    %p98 = scmp.ne.s32.totalorder %s93, %s95
    %p99 = scmp.eq.s32.totalorder %s12, 0
    %p100 = por %p98, %p99
    %p101 = scmp.ne.s32.totalorder %s93, %s95
    %p102 = scmp.eq.s32.totalorder %s17, 1
    %p103 = por %p101, %p102
    %p104 = scmp.ne.s32.totalorder %s95, %s96
    %p105 = scmp.eq.s32.totalorder %s17, 0
    %p106 = por %p104, %p105
    %p107 = scmp.ne.s32.totalorder %s95, %s96
    %p108 = scmp.eq.s32.totalorder %s18, 1
    %p109 = por %p107, %p108
    %p111 = scmp.ne.s32.totalorder %s96, %s110
    %p112 = scmp.eq.s32.totalorder %s18, 0
    %p113 = por %p111, %p112
    %s115 = sadd.s32 %s114, 1
    %p118 = scmp.eq.s32.totalorder %s12, 1
    %p119 = scmp.ne.s32.totalorder %s114, %s116
    %p120 = scmp.eq.s32.totalorder %s12, 0
    %p121 = por %p119, %p120
    %p122 = scmp.ne.s32.totalorder %s114, %s116
    %p123 = scmp.eq.s32.totalorder %s17, 1
    %p124 = por %p122, %p123
    %p125 = scmp.ne.s32.totalorder %s116, %s117
    %p126 = scmp.eq.s32.totalorder %s17, 0
    %p127 = por %p125, %p126
    %p128 = scmp.ne.s32.totalorder %s116, %s117
    %p129 = scmp.eq.s32.totalorder %s18, 1
    %p130 = por %p128, %p129
    %p132 = scmp.ne.s32.totalorder %s117, %s131
    %p133 = scmp.eq.s32.totalorder %s18, 0
    %p134 = por %p132, %p133
    %s136 = sadd.s32 %s135, 1
    %p139 = scmp.eq.s32.totalorder %s12, 1
    %p140 = scmp.ne.s32.totalorder %s135, %s137
    %p141 = scmp.eq.s32.totalorder %s12, 0
    %p142 = por %p140, %p141
    %p143 = scmp.ne.s32.totalorder %s135, %s137
    %p144 = scmp.eq.s32.totalorder %s17, 1
    %p145 = por %p143, %p144
    %p146 = scmp.ne.s32.totalorder %s137, %s138
    %p147 = scmp.eq.s32.totalorder %s17, 0
    %p148 = por %p146, %p147
    %p149 = scmp.ne.s32.totalorder %s137, %s138
    %p150 = scmp.eq.s32.totalorder %s18, 1
    %p151 = por %p149, %p150
    %p153 = scmp.ne.s32.totalorder %s138, %s152
    %p154 = scmp.eq.s32.totalorder %s18, 0
    %p155 = por %p153, %p154
    %s156 = ssub.s32 %s12, %s19
    %p157 = scmp.eq.s32.totalorder %s156, 0
    %s159 = sadd.s32 %s158, 1
    %s160 = scalar_select %p157, %s158, %s159
    %p163 = pneg %p157
    %p164 = scmp.eq.s32.totalorder %s12, 1
    %p165 = por %p163, %p164
    %p166 = scmp.ne.s32.totalorder %s158, %s161
    %p167 = scmp.eq.s32.totalorder %s12, 0
    %p168 = por %p166, %p167
    %p169 = scmp.ne.s32.totalorder %s158, %s161
    %p170 = scmp.eq.s32.totalorder %s17, 1
    %p171 = por %p169, %p170
    %p172 = scmp.ne.s32.totalorder %s161, %s162
    %p173 = scmp.eq.s32.totalorder %s17, 0
    %p174 = por %p172, %p173
    %p175 = scmp.ne.s32.totalorder %s161, %s162
    %p176 = scmp.eq.s32.totalorder %s18, 1
    %p177 = por %p175, %p176
    %p179 = scmp.ne.s32.totalorder %s162, %s178
    %p180 = scmp.eq.s32.totalorder %s18, 0
    %p181 = por %p179, %p180
    %p182 = scmp.le.s32.totalorder 1, %s12
    %p183 = scmp.lt.s32.totalorder %s12, 3
    %p184 = pnand %p182, %p183
    %p185 = pneg %p184
    // Predicated region
    $region9: #{tpu_custom_call.1} parent=5 // pred_check
      _
    $region10: #{tpu_custom_call.1} parent=5 // pred_check_branch
      %187 = sbr.rel (%p184) target = $region12
    $region11: #{tpu_custom_call.1} parent=5 // pred_region
      %s188 = ssub.s32 %s12, 1
      // Predicated region
      $region13: #{tpu_custom_call.1} parent=11 // pred_check
        %p189 = pneg %p85
      $region14: #{tpu_custom_call.1} parent=11 // pred_check_branch
        %191 = sbr.rel (%p189) target = $region16
      $region15: #{tpu_custom_call.1} parent=11 // pred_region
        _
      $region16: #{tpu_custom_call.1} parent=11 // pred_fallthru
        _
      // Predicated region
      $region17: #{tpu_custom_call.1} parent=11 // pred_check
        %p192 = pneg %p106
      $region18: #{tpu_custom_call.1} parent=11 // pred_check_branch
        %194 = sbr.rel (%p192) target = $region20
      $region19: #{tpu_custom_call.1} parent=11 // pred_region
        _
      $region20: #{tpu_custom_call.1} parent=11 // pred_fallthru
        _
      // Predicated region
      $region21: #{tpu_custom_call.1} parent=11 // pred_check
        %p195 = pneg %p127
      $region22: #{tpu_custom_call.1} parent=11 // pred_check_branch
        %197 = sbr.rel (%p195) target = $region24
      $region23: #{tpu_custom_call.1} parent=11 // pred_region
        _
      $region24: #{tpu_custom_call.1} parent=11 // pred_fallthru
        _
      // Predicated region
      $region25: #{tpu_custom_call.1} parent=11 // pred_check
        %p198 = pneg %p148
      $region26: #{tpu_custom_call.1} parent=11 // pred_check_branch
        %200 = sbr.rel (%p198) target = $region28
      $region27: #{tpu_custom_call.1} parent=11 // pred_region
        _
      $region28: #{tpu_custom_call.1} parent=11 // pred_fallthru
        _
    $region12: #{tpu_custom_call.1} parent=5 // pred_fallthru
      _
    %p201 = scmp.lt.s32.totalorder %s12, 2
    // Predicated region
    $region29: #{tpu_custom_call.1} parent=5 // pred_check
      %p202 = pneg %p201
    $region30: #{tpu_custom_call.1} parent=5 // pred_check_branch
      %204 = sbr.rel (%p202) target = $region32
    $region31: #{tpu_custom_call.1} parent=5 // pred_region
      // Predicated region
      $region33: #{tpu_custom_call.1} parent=31 // pred_check
        %p205 = pneg %p32
      $region34: #{tpu_custom_call.1} parent=31 // pred_check_branch
        %207 = sbr.rel (%p205) target = $region36
      $region35: #{tpu_custom_call.1} parent=31 // pred_region
        %s208 = smul.u32 4, %s12
        %p209 = scmp.lt.s32.totalorder %s208, 7
        %s210 = scalar_select %p209, %s208, 7
        %s211 = smul.addr %s210, 8
        %s212 = scalar_lea.vmem %s0, %s211
        %s213 = smul.u32 4, %s12
      $region36: #{tpu_custom_call.1} parent=31 // pred_fallthru
        _
      // Predicated region
      $region37: #{tpu_custom_call.1} parent=31 // pred_check
        %p214 = pneg %p58
      $region38: #{tpu_custom_call.1} parent=31 // pred_check_branch
        %216 = sbr.rel (%p214) target = $region40
      $region39: #{tpu_custom_call.1} parent=31 // pred_region
        %s217 = smul.u32 4, %s12
        %p218 = scmp.lt.s32.totalorder %s217, 7
        %s219 = scalar_select %p218, %s217, 7
        %s220 = smul.addr %s219, 8
        %s221 = scalar_lea.vmem %s1, %s220
        %s222 = smul.u32 4, %s12
      $region40: #{tpu_custom_call.1} parent=31 // pred_fallthru
        _
    $region32: #{tpu_custom_call.1} parent=5 // pred_fallthru
      _
    %p223 = scmp.le.s32.totalorder 1, %s12
    %p224 = scmp.lt.s32.totalorder %s12, 3
    %p225 = pnand %p223, %p224
    %p226 = pneg %p225
    // Predicated region
    $region41: #{tpu_custom_call.1} parent=5 // pred_check
      _
    $region42: #{tpu_custom_call.1} parent=5 // pred_check_branch
      %228 = sbr.rel (%p225) target = $region44
    $region43: #{tpu_custom_call.1} parent=5 // pred_region
      %s229 = ssub.s32 %s12, 1
      %s230 = smul.u32 4, %s17
      %p231 = scmp.lt.s32.totalorder %s230, 7
      %s232 = scalar_select %p231, %s230, 7
      %s233 = smul.addr %s232, 8
      %s234 = scalar_lea.vmem %s0, %s233
      %p235 = pneg %p38
      %p236 = pneg %p35
      %s237 = smul.u32 4, %s17
      %p238 = scmp.lt.s32.totalorder %s237, 7
      %s239 = scalar_select %p238, %s237, 7
      %s240 = smul.addr %s239, 8
      %s241 = scalar_lea.vmem %s1, %s240
      %p242 = pneg %p64
      %p243 = pneg %p61
      %p244 = pneg %p85
      %p245 = pneg %p82
      %p246 = pneg %p106
      %p247 = pneg %p103
      %p248 = pneg %p127
      %p249 = pneg %p124
      %p250 = pneg %p148
      %p251 = pneg %p145
      %p252 = pneg %p174
      %p253 = pneg %p171
      %s254 = smul.u32 4, %s17
      %p255 = scmp.lt.s32.totalorder %s254, 7
      %s256 = scalar_select %p255, %s254, 7
      %s257 = smul.addr %s256, 8
      %s258 = scalar_lea.vmem %s6, %s257
      %s259 = smul.u32 4, %s17
      %p260 = scmp.lt.s32.totalorder %s259, 7
      %s261 = scalar_select %p260, %s259, 7
      %s262 = smul.addr %s261, 8
      %s263 = scalar_lea.vmem %s0, %s262
      %s264 = smul.u32 4, %s17
      %s265 = smul.u32 4, %s17
      %p266 = scmp.lt.s32.totalorder %s265, 7
      %s267 = scalar_select %p266, %s265, 7
      %s268 = smul.addr %s267, 8
      %s269 = scalar_lea.vmem %s1, %s268
      %s270 = smul.u32 4, %s17
      %s271 = smul.u32 4, %s17
      %p272 = scmp.lt.s32.totalorder %s271, 7
      %s273 = scalar_select %p272, %s271, 7
      %s274 = smul.addr %s273, 8
      %s275 = scalar_lea.vmem %s6, %s274
      %s276 = smul.u32 4, %s17
      %v277 = vld [vmem:[%s263] sm:$0xff]
      %v278 = vld [vmem:[%s263 + $0x8] sm:$0xff]
      %v279 = vld [vmem:[%s263 + $0x10] sm:$0xff]
      %v280 = vld [vmem:[%s263 + $0x18] sm:$0xff]
      %v281 = vld [vmem:[%s269] sm:$0xff]
      %v282 = vld [vmem:[%s269 + $0x8] sm:$0xff]
      %v283 = vld [vmem:[%s269 + $0x10] sm:$0xff]
      %v284 = vld [vmem:[%s269 + $0x18] sm:$0xff]
      %v285 = vld [vmem:[%s2] sm:$0xff]
      %v286 = vld [vmem:[%s2 + $0x8] sm:$0xff]
      %v287 = vld [vmem:[%s2 + $0x10] sm:$0xff]
      %v288 = vld [vmem:[%s2 + $0x18] sm:$0xff]
      %v289 = vld [vmem:[%s2 + $0x20] sm:$0xf]
      %v290 = vld [vmem:[%s2 + $0x28] sm:$0xf]
      %v291 = vld [vmem:[%s3] sm:$0x3]
      %v293 = vlaneseq
      %v294 = vshrl.u32 %v293, 7
      %v295 = vsub.s32 0, %v294
      %v296 = vrot.slane %v291, %v295
      %v297 = vlaneseq
      %v298 = vshrl.u32 %v297, 7
      %v299 = vsub.s32 1, %v298
      %v300 = vrot.slane %v291, %v299
      %vm303 = vcmask 162816
      %v305 = vsel %vm303, %v277, 0
      %v308 = vsel %vm303, %v278, 0
      %v311 = vsel %vm303, %v279, 0
      %v314 = vsel %vm303, %v280, 0
      %vm316 = vcmask 1043456
      %v318 = vsel %vm316, %v289, 0
      %v321 = vsel %vm316, %v290, 0
      %323 = vmatprep.subr.mxu0 0.0
      %324 = vmatpush1.msra.mxu0 0.0
      %325 = vmatprep.subr.mxu0 0.0
      %326 = vmatpush1.msra.mxu0 0.0
      %327 = vmatprep.subr.mxu0 0.0
      %328 = vmatpush1.msra.mxu0 0.0
      %329 = vmatprep.subr.mxu0 0.0
      %330 = vmatpush1.msra.mxu0 0.0
      %331 = vmatprep.subr.mxu0 0.0
      %332 = vmatpush1.msra.mxu0 0.0
      %333 = vmatprep.subr.mxu0 0.0
      %334 = vmatpush1.msra.mxu0 0.0
      %335 = vmatprep.subr.mxu0 0.0
      %336 = vmatpush1.msra.mxu0 0.0
      %337 = vmatprep.subr.mxu0 0.0
      %338 = vmatpush1.msra.mxu0 0.0
      %339 = vmatprep.subr.mxu0 0.0
      %340 = vmatpush1.msra.mxu0 0.0
      %341 = vmatprep.subr.mxu0 0.0
      %342 = vmatpush1.msra.mxu0 0.0
      %343 = vmatprep.subr.mxu0 0.0
      %344 = vmatpush1.msra.mxu0 0.0
      %345 = vmatprep.subr.mxu0 0.0
      %346 = vmatpush1.msra.mxu0 0.0
      %347 = vmatprep.subr.mxu0 0.0
      %348 = vmatpush1.msra.mxu0 0.0
      %349 = vmatprep.subr.mxu0 %v321
      %350 = vmatpush1.msra.mxu0 %v318
      %351 = vmatprep.subr.mxu0 %v288
      %352 = vmatpush1.msra.mxu0 %v287
      %353 = vmatprep.subr.mxu0 %v286
      %354 = vmatpush1.msra.mxu0 %v285
      %355 = vmatprep.subr.mxu0 0.0
      %356 = vmatpush2.msra.mxu0 0.0
      %357 = vmatprep.subr.mxu0 0.0
      %358 = vmatpush2.msra.mxu0 0.0
      %359 = vmatprep.subr.mxu0 0.0
      %360 = vmatpush2.msra.mxu0 0.0
      %361 = vmatprep.subr.mxu0 0.0
      %362 = vmatpush2.msra.mxu0 0.0
      %363 = vmatprep.subr.mxu0 0.0
      %364 = vmatpush2.msra.mxu0 0.0
      %365 = vmatprep.subr.mxu0 0.0
      %366 = vmatpush2.msra.mxu0 0.0
      %367 = vmatprep.subr.mxu0 0.0
      %368 = vmatpush2.msra.mxu0 0.0
      %369 = vmatprep.subr.mxu0 0.0
      %370 = vmatpush2.msra.mxu0 0.0
      %371 = vmatprep.subr.mxu0 0.0
      %372 = vmatpush2.msra.mxu0 0.0
      %373 = vmatprep.subr.mxu0 0.0
      %374 = vmatpush2.msra.mxu0 0.0
      %375 = vmatprep.subr.mxu0 0.0
      %376 = vmatpush2.msra.mxu0 0.0
      %377 = vmatprep.subr.mxu0 0.0
      %378 = vmatpush2.msra.mxu0 0.0
      %379 = vmatprep.subr.mxu0 0.0
      %380 = vmatpush2.msra.mxu0 0.0
      %381 = vmatprep.subr.mxu0 0.0
      %382 = vmatpush2.msra.mxu0 0.0
      %383 = vmatprep.subr.mxu0 0.0
      %384 = vmatpush2.msra.mxu0 0.0
      %385 = vmatprep.subr.mxu0 0.0
      %386 = vmatpush2.msra.mxu0 0.0
      %387 = vmatprep.mubr.f32.mxu0 0.0
      %388 = vmatmul.mubr.f32.gmra.mxu0 %v305
      %v389 = vpop.f32.mrf.mxu0
      %v390 = vadd.f32 %v296, %v389
      %v391 = vpop.f32.mrf.mxu0
      %v392 = vadd.f32 %v300, %v391
      %393 = vmatprep.mubr.f32.mxu0 0.0
      %394 = vmatmul.mubr.f32.gmra.mxu0 %v308
      %v395 = vpop.f32.mrf.mxu0
      %v396 = vadd.f32 %v296, %v395
      %v397 = vpop.f32.mrf.mxu0
      %v398 = vadd.f32 %v300, %v397
      %399 = vmatprep.mubr.f32.mxu0 0.0
      %400 = vmatmul.mubr.f32.gmra.mxu0 %v311
      %v401 = vpop.f32.mrf.mxu0
      %v402 = vadd.f32 %v296, %v401
      %v403 = vpop.f32.mrf.mxu0
      %v404 = vadd.f32 %v300, %v403
      %405 = vmatprep.mubr.f32.mxu0 0.0
      %406 = vmatmul.mubr.f32.gmra.mxu0 %v314
      %v407 = vpop.f32.mrf.mxu0
      %v408 = vadd.f32 %v296, %v407
      %v409 = vpop.f32.mrf.mxu0
      %v410 = vadd.f32 %v300, %v409
      %411 = vdwg.mxu0
      %v412 = vld [vmem:[%s4] sm:$0xff]
      %v413 = vld [vmem:[%s4 + $0x8] sm:$0xff]
      %v414 = vld [vmem:[%s4 + $0x10] sm:$0xff]
      %v415 = vld [vmem:[%s4 + $0x18] sm:$0xff]
      %v416 = vld [vmem:[%s4 + $0x20] sm:$0xf]
      %v417 = vld [vmem:[%s4 + $0x28] sm:$0xf]
      %v419 = vsel %vm303, %v281, 0
      %v422 = vsel %vm303, %v282, 0
      %v425 = vsel %vm303, %v283, 0
      %v428 = vsel %vm303, %v284, 0
      %v431 = vsel %vm316, %v416, 0
      %v434 = vsel %vm316, %v417, 0
      %436 = vmatprep.subr.mxu0 0.0
      %437 = vmatpush1.msra.mxu0 0.0
      %438 = vmatprep.subr.mxu0 0.0
      %439 = vmatpush1.msra.mxu0 0.0
      %440 = vmatprep.subr.mxu0 0.0
      %441 = vmatpush1.msra.mxu0 0.0
      %442 = vmatprep.subr.mxu0 0.0
      %443 = vmatpush1.msra.mxu0 0.0
      %444 = vmatprep.subr.mxu0 0.0
      %445 = vmatpush1.msra.mxu0 0.0
      %446 = vmatprep.subr.mxu0 0.0
      %447 = vmatpush1.msra.mxu0 0.0
      %448 = vmatprep.subr.mxu0 0.0
      %449 = vmatpush1.msra.mxu0 0.0
      %450 = vmatprep.subr.mxu0 0.0
      %451 = vmatpush1.msra.mxu0 0.0
      %452 = vmatprep.subr.mxu0 0.0
      %453 = vmatpush1.msra.mxu0 0.0
      %454 = vmatprep.subr.mxu0 0.0
      %455 = vmatpush1.msra.mxu0 0.0
      %456 = vmatprep.subr.mxu0 0.0
      %457 = vmatpush1.msra.mxu0 0.0
      %458 = vmatprep.subr.mxu0 0.0
      %459 = vmatpush1.msra.mxu0 0.0
      %460 = vmatprep.subr.mxu0 0.0
      %461 = vmatpush1.msra.mxu0 0.0
      %462 = vmatprep.subr.mxu0 %v434
      %463 = vmatpush1.msra.mxu0 %v431
      %464 = vmatprep.subr.mxu0 %v415
      %465 = vmatpush1.msra.mxu0 %v414
      %466 = vmatprep.subr.mxu0 %v413
      %467 = vmatpush1.msra.mxu0 %v412
      %468 = vmatprep.subr.mxu0 0.0
      %469 = vmatpush2.msra.mxu0 0.0
      %470 = vmatprep.subr.mxu0 0.0
      %471 = vmatpush2.msra.mxu0 0.0
      %472 = vmatprep.subr.mxu0 0.0
      %473 = vmatpush2.msra.mxu0 0.0
      %474 = vmatprep.subr.mxu0 0.0
      %475 = vmatpush2.msra.mxu0 0.0
      %476 = vmatprep.subr.mxu0 0.0
      %477 = vmatpush2.msra.mxu0 0.0
      %478 = vmatprep.subr.mxu0 0.0
      %479 = vmatpush2.msra.mxu0 0.0
      %480 = vmatprep.subr.mxu0 0.0
      %481 = vmatpush2.msra.mxu0 0.0
      %482 = vmatprep.subr.mxu0 0.0
      %483 = vmatpush2.msra.mxu0 0.0
      %484 = vmatprep.subr.mxu0 0.0
      %485 = vmatpush2.msra.mxu0 0.0
      %486 = vmatprep.subr.mxu0 0.0
      %487 = vmatpush2.msra.mxu0 0.0
      %488 = vmatprep.subr.mxu0 0.0
      %489 = vmatpush2.msra.mxu0 0.0
      %490 = vmatprep.subr.mxu0 0.0
      %491 = vmatpush2.msra.mxu0 0.0
      %492 = vmatprep.subr.mxu0 0.0
      %493 = vmatpush2.msra.mxu0 0.0
      %494 = vmatprep.subr.mxu0 0.0
      %495 = vmatpush2.msra.mxu0 0.0
      %496 = vmatprep.subr.mxu0 0.0
      %497 = vmatpush2.msra.mxu0 0.0
      %498 = vmatprep.subr.mxu0 0.0
      %499 = vmatpush2.msra.mxu0 0.0
      %500 = vmatprep.mubr.f32.mxu0 0.0
      %501 = vmatmul.mubr.f32.gmra.mxu0 %v419
      %v502 = vpop.f32.mrf.mxu0
      %v503 = vadd.f32 0.0, %v502
      %v504 = vpop.f32.mrf.mxu0
      %v505 = vadd.f32 0.0, %v504
      %506 = vmatprep.mubr.f32.mxu0 0.0
      %507 = vmatmul.mubr.f32.gmra.mxu0 %v422
      %v508 = vpop.f32.mrf.mxu0
      %v509 = vadd.f32 0.0, %v508
      %v510 = vpop.f32.mrf.mxu0
      %v511 = vadd.f32 0.0, %v510
      %512 = vmatprep.mubr.f32.mxu0 0.0
      %513 = vmatmul.mubr.f32.gmra.mxu0 %v425
      %v514 = vpop.f32.mrf.mxu0
      %v515 = vadd.f32 0.0, %v514
      %v516 = vpop.f32.mrf.mxu0
      %v517 = vadd.f32 0.0, %v516
      %518 = vmatprep.mubr.f32.mxu0 0.0
      %519 = vmatmul.mubr.f32.gmra.mxu0 %v428
      %v520 = vpop.f32.mrf.mxu0
      %v521 = vadd.f32 0.0, %v520
      %v522 = vpop.f32.mrf.mxu0
      %v523 = vadd.f32 0.0, %v522
      %524 = vdwg.mxu0
      %v525 = vtanh.pop %v390
      %v526 = vtanh.pop %v396
      %v527 = vtanh.pop %v402
      %v528 = vtanh.pop %v408
      %v529 = vld [vmem:[%s5] sm:$0x1]
      %v531 = vlaneseq
      %v532 = vshrl.u32 %v531, 7
      %v533 = vsub.s32 0, %v532
      %v534 = vrot.slane %v529, %v533
      %v536 = vadd.f32 %v503, %v534
      %v537 = vadd.f32 %v509, %v534
      %v538 = vadd.f32 %v515, %v534
      %v539 = vadd.f32 %v521, %v534
      %v540 = vtanh.pop %v536
      %v541 = vtanh.pop %v537
      %v542 = vtanh.pop %v538
      %v543 = vtanh.pop %v539
      %v544 = vadd.f32 %v392, %v505
      %v545 = vadd.f32 %v398, %v511
      %v546 = vadd.f32 %v404, %v517
      %v547 = vadd.f32 %v410, %v523
      %v548 = vmul.f32 %v544, 0.5
      %v549 = vmul.f32 %v545, 0.5
      %v550 = vmul.f32 %v546, 0.5
      %v551 = vmul.f32 %v547, 0.5
      %v552 = vtanh.pop %v548
      %v553 = vtanh.pop %v549
      %v554 = vtanh.pop %v550
      %v555 = vtanh.pop %v551
      %v556 = vadd.f32 %v552, 1.0
      %v557 = vadd.f32 %v553, 1.0
      %v558 = vadd.f32 %v554, 1.0
      %v559 = vadd.f32 %v555, 1.0
      %v560 = vmul.f32 %v556, 0.5
      %v561 = vmul.f32 %v557, 0.5
      %v562 = vmul.f32 %v558, 0.5
      %v563 = vmul.f32 %v559, 0.5
      %v564 = vsub.f32 %v525, %v540
      %v565 = vsub.f32 %v526, %v541
      %v566 = vsub.f32 %v527, %v542
      %v567 = vsub.f32 %v528, %v543
      %v568 = vmul.f32 %v560, %v564
      %v569 = vmul.f32 %v561, %v565
      %v570 = vmul.f32 %v562, %v566
      %v571 = vmul.f32 %v563, %v567
      %v572 = vadd.f32 %v540, %v568
      %v573 = vadd.f32 %v541, %v569
      %v574 = vadd.f32 %v542, %v570
      %v575 = vadd.f32 %v543, %v571
      %576 = vst.msk [vmem:[%s275] sm:$0xff] %vm303, %v572
      %577 = vst.msk [vmem:[%s275 + $0x8] sm:$0xff] %vm303, %v573
      %578 = vst.msk [vmem:[%s275 + $0x10] sm:$0xff] %vm303, %v574
      %579 = vst.msk [vmem:[%s275 + $0x18] sm:$0xff] %vm303, %v575
      %s580 = smul.u32 4, %s17
      %p581 = scmp.lt.s32.totalorder %s580, 7
      %s582 = scalar_select %p581, %s580, 7
      %s583 = smul.addr %s582, 8
      %s584 = scalar_lea.vmem %s6, %s583
      // Predicated region
      $region45: #{tpu_custom_call.1} parent=43 // pred_check
        %p585 = pneg %p171
      $region46: #{tpu_custom_call.1} parent=43 // pred_check_branch
        %587 = sbr.rel (%p585) target = $region48
      $region47: #{tpu_custom_call.1} parent=43 // pred_region
        %s588 = smul.u32 4, %s17
      $region48: #{tpu_custom_call.1} parent=43 // pred_fallthru
        _
    $region44: #{tpu_custom_call.1} parent=5 // pred_fallthru
      _
    %p589 = scmp.le.s32.totalorder 2, %s12
    // Predicated region
    $region49: #{tpu_custom_call.1} parent=5 // pred_check
      %p590 = pneg %p589
    $region50: #{tpu_custom_call.1} parent=5 // pred_check_branch
      %592 = sbr.rel (%p590) target = $region52
    $region51: #{tpu_custom_call.1} parent=5 // pred_region
      %s593 = ssub.s32 %s12, 2
      // Predicated region
      $region53: #{tpu_custom_call.1} parent=51 // pred_check
        %p594 = pneg %p177
      $region54: #{tpu_custom_call.1} parent=51 // pred_check_branch
        %596 = sbr.rel (%p594) target = $region56
      $region55: #{tpu_custom_call.1} parent=51 // pred_region
        %s597 = smul.u32 4, %s18
        %p598 = scmp.lt.s32.totalorder %s597, 7
        %s599 = scalar_select %p598, %s597, 7
        %s600 = smul.addr %s599, 8
        %s601 = scalar_lea.vmem %s6, %s600
      $region56: #{tpu_custom_call.1} parent=51 // pred_fallthru
        _
    $region52: #{tpu_custom_call.1} parent=5 // pred_fallthru
      _
  $region6: #{tpu_custom_call.1} parent=0 // loop_footer
    %s16 = sadd.s32 1, %s12
  $region7: #{tpu_custom_call.1} parent=0 // loop_footer_branch
    %11 = sbr.rel target = $region3
  $region8: #{tpu_custom_call.1} parent=0 // loop_exit
    _

</llo_original>
